<compile_context>
chip_gen: v7x
topology: tpu7x:2x2x1
jax: 0.10.0
libtpu: 0.0.40
codegen_flags: <defaults>
</compile_context>

<pallas_src>
import functools

import jax
import jax.numpy as jnp
from jax.experimental import pallas as pl
from jax.experimental.pallas import tpu as pltpu


def _fire_kernel(x_ref, wsq_ref, bsq_ref, wexp_ref, bexp_ref, mask_ref,
                 out_ref, *, H, W):
    # x_ref:    (N, Cin, H*W)   bf16, lanes = H*W (lane-dense NCHW view)
    # wsq_ref:  (S, Cin)        bf16 squeeze 1x1 weights
    # bsq_ref:  (S, 1)          f32
    # wexp_ref: (E1+E3, 9*S)    bf16 K-stacked expand weights:
    #                             rows 0..E1  : expand1x1 (center-tap K slice)
    #                             rows E1..   : expand3x3, K slice t=(ky,kx) row-major
    # bexp_ref: (E1+E3, 1)      f32 [b1 ; b3]
    # mask_ref: (9, H*W)        f32 per-tap zero-padding boundary masks
    # out_ref:  (N, E1+E3, H*W) f32 [expand1x1 ; expand3x3] on the channel axis
    N = x_ref.shape[0]
    HW = H * W

    # Grid-invariant operands: load once, outside the batch loop.
    wsq = wsq_ref[...]
    wexp = wexp_ref[...]
    bsq = bsq_ref[...]
    bexp = bexp_ref[...]
    masks = mask_ref[...]
    tap_masks = [masks[t:t + 1, :] for t in range(9)]          # (1, HW) each

    for n in range(N):  # N is small & static: fully unrolled
        x = x_ref[n]                                           # (Cin, HW) bf16

        # --- squeeze 1x1 conv + ReLU (one MXU matmul, f32 accumulate) ---
        sq = jnp.dot(wsq, x, preferred_element_type=jnp.float32)
        sq = jnp.maximum(sq + bsq, 0.0)                        # (S, HW) f32

        # --- implicit im2col: 9 lane-rolled, boundary-masked copies of sq
        # stacked along K.  Shifting the matmul *input* is equivalent to
        # shifting its output since the contraction is only over channels.
        taps = []
        tap = 0
        for dy in (-1, 0, 1):
            for dx in (-1, 0, 1):
                if dy == 0 and dx == 0:
                    taps.append(sq)                            # center: no shift/mask
                else:
                    off = dy * W + dx                          # flat lane offset
                    shifted = pltpu.roll(sq, shift=(-off) % HW, axis=1)
                    taps.append(shifted * tap_masks[tap])
                tap += 1
        sq_k = jnp.concatenate(taps, axis=0).astype(jnp.bfloat16)   # (9*S, HW)

        # --- fused expand1x1 + expand3x3: ONE matmul (E1+E3, 9S)@(9S, HW) ---
        y = jnp.dot(wexp, sq_k, preferred_element_type=jnp.float32)
        y = jnp.maximum(y + bexp, 0.0)                         # (E1+E3, HW) f32
        out_ref[n] = y.astype(out_ref.dtype)


@jax.jit
def fire_pallas(x_nchw, torch_weights):
    """Fire forward.  x_nchw: (N, Cin, H, W) f32; weights in PyTorch OIHW."""
    ws_oihw, bs, w1_oihw, b1, w3_oihw, b3 = torch_weights
    N, Cin, H, W = x_nchw.shape
    S = ws_oihw.shape[0]
    E1 = w1_oihw.shape[0]
    E3 = w3_oihw.shape[0]
    HW = H * W

    # --- parameter-side repacking (tiny, outside the kernel) ------------
    wsq = ws_oihw[:, :, 0, 0].astype(jnp.bfloat16)               # (S, Cin)
    bsq = bs[:, None].astype(jnp.float32)                        # (S, 1)

    # K-stacked expand weights: (E1+E3, 9*S).
    w1 = w1_oihw[:, :, 0, 0]                                     # (E1, S)
    w1_k = jnp.zeros((E1, 9 * S), w1.dtype).at[:, 4 * S:5 * S].set(w1)
    w3_k = jnp.transpose(w3_oihw, (0, 2, 3, 1)).reshape(E3, 9 * S)
    wexp = jnp.concatenate([w1_k, w3_k], axis=0).astype(jnp.bfloat16)
    bexp = jnp.concatenate([b1, b3])[:, None].astype(jnp.float32)  # (E1+E3, 1)

    # Per-tap zero-padding boundary masks, hoisted out of the kernel.
    lane = jnp.arange(HW, dtype=jnp.int32)
    hh, ww = lane // W, lane % W
    rows = []
    for dy in (-1, 0, 1):
        for dx in (-1, 0, 1):
            rows.append(((hh + dy >= 0) & (hh + dy < H) &
                         (ww + dx >= 0) & (ww + dx < W)).astype(jnp.float32))
    masks = jnp.stack(rows, axis=0)                              # (9, HW)

    # Lane-dense NCHW view; bf16 halves the dominant x DMA bytes.
    x_flat = x_nchw.reshape(N, Cin, HW).astype(jnp.bfloat16)

    out = pl.pallas_call(
        functools.partial(_fire_kernel, H=H, W=W),
        out_shape=jax.ShapeDtypeStruct((N, E1 + E3, HW), jnp.float32),
        grid_spec=pltpu.PrefetchScalarGridSpec(
            num_scalar_prefetch=0,
            grid=(1,),                       # whole batch in one grid step
            in_specs=[
                pl.BlockSpec((N, Cin, HW), lambda i: (0, 0, 0)),
                pl.BlockSpec((S, Cin), lambda i: (0, 0)),
                pl.BlockSpec((S, 1), lambda i: (0, 0)),
                pl.BlockSpec((E1 + E3, 9 * S), lambda i: (0, 0)),
                pl.BlockSpec((E1 + E3, 1), lambda i: (0, 0)),
                pl.BlockSpec((9, HW), lambda i: (0, 0)),
            ],
            out_specs=pl.BlockSpec((N, E1 + E3, HW), lambda i: (0, 0, 0)),
        ),
        compiler_params=pltpu.CompilerParams(
            dimension_semantics=("arbitrary",)),
    )(x_flat, wsq, bsq, wexp, bexp, masks)

    return out.reshape(N, E1 + E3, H, W)


def fire_reference(x_nchw, torch_weights):
    """Pure-JAX f32 reference mirroring the PyTorch module exactly (NCHW)."""
    ws_oihw, bs, w1_oihw, b1, w3_oihw, b3 = torch_weights
    dn = ("NCHW", "OIHW", "NCHW")
    y = jax.lax.conv_general_dilated(x_nchw, ws_oihw, (1, 1), "VALID",
                                     dimension_numbers=dn)
    y = jax.nn.relu(y + bs[None, :, None, None])
    e1 = jax.lax.conv_general_dilated(y, w1_oihw, (1, 1), "VALID",
                                      dimension_numbers=dn)
    e1 = jax.nn.relu(e1 + b1[None, :, None, None])
    e3 = jax.lax.conv_general_dilated(y, w3_oihw, (1, 1), "SAME",
                                      dimension_numbers=dn)
    e3 = jax.nn.relu(e3 + b3[None, :, None, None])
    return jnp.concatenate([e1, e3], axis=1)


if __name__ == "__main__":
    # Fire(input=4, squeeze=8, expand3x3=8, expand1x1=8), x: (2, 4, 16, 16)
    N, Cin, H, W = 2, 4, 16, 16
    S, E3, E1 = 8, 8, 8

    key = jax.random.PRNGKey(0)
    ks = jax.random.split(key, 7)
    # Deterministic parameter init in PyTorch OIHW conv layout.
    ws_oihw = jax.random.normal(ks[0], (S, Cin, 1, 1), jnp.float32) * 0.2
    bs      = jax.random.normal(ks[1], (S,), jnp.float32) * 0.1
    w1_oihw = jax.random.normal(ks[2], (E1, S, 1, 1), jnp.float32) * 0.2
    b1      = jax.random.normal(ks[3], (E1,), jnp.float32) * 0.1
    w3_oihw = jax.random.normal(ks[4], (E3, S, 3, 3), jnp.float32) * 0.2
    b3      = jax.random.normal(ks[5], (E3,), jnp.float32) * 0.1
    x       = jax.random.normal(ks[6], (N, Cin, H, W), jnp.float32)

    weights = (ws_oihw, bs, w1_oihw, b1, w3_oihw, b3)

    out = jax.block_until_ready(fire_pallas(x, weights))
    ref = jax.block_until_ready(fire_reference(x, weights))

    assert out.shape == (N, E1 + E3, H, W), out.shape
    # bf16 matmul operands (f32 accumulate) -> loosened tolerance vs f32 ref.
    assert jnp.allclose(out, ref, atol=5e-2, rtol=5e-2), \
        float(jnp.max(jnp.abs(out - ref)))
    print("KERNEL_OK")
</pallas_src>

<mosaic_0001>
module attributes {stable_mosaic.version = 11 : i64} {
  func.func @_fire_kernel(%arg0: i32, %arg1: memref<2x4x256xbf16, #tpu.memory_space<vmem>>, %arg2: memref<8x4xbf16, #tpu.memory_space<vmem>>, %arg3: memref<8x1xf32, #tpu.memory_space<vmem>>, %arg4: memref<16x72xbf16, #tpu.memory_space<vmem>>, %arg5: memref<16x1xf32, #tpu.memory_space<vmem>>, %arg6: memref<9x256xf32, #tpu.memory_space<vmem>>, %arg7: memref<2x16x256xf32, #tpu.memory_space<vmem>>) attributes {dimension_semantics = [#tpu.dimension_semantics<arbitrary>], iteration_bounds = array<i64: 1>, scalar_prefetch = 0 : i64, scratch_operands = 0 : i64, tpu.core_type = #tpu.core_type<tc>, window_params = [{pipeline_mode = #tpu.pipeline_mode<synchronous>, transform_indices = @transform_0, window_bounds = array<i64: 2, 4, 256>}, {pipeline_mode = #tpu.pipeline_mode<synchronous>, transform_indices = @transform_1, window_bounds = array<i64: 8, 4>}, {pipeline_mode = #tpu.pipeline_mode<synchronous>, transform_indices = @transform_2, window_bounds = array<i64: 8, 1>}, {pipeline_mode = #tpu.pipeline_mode<synchronous>, transform_indices = @transform_3, window_bounds = array<i64: 16, 72>}, {pipeline_mode = #tpu.pipeline_mode<synchronous>, transform_indices = @transform_4, window_bounds = array<i64: 16, 1>}, {pipeline_mode = #tpu.pipeline_mode<synchronous>, transform_indices = @transform_5, window_bounds = array<i64: 9, 256>}, {pipeline_mode = #tpu.pipeline_mode<synchronous>, transform_indices = @transform_6, window_bounds = array<i64: 2, 16, 256>}]} {
    %c0 = arith.constant 0 : index
    %c0_0 = arith.constant 0 : index
    %0 = vector.load %arg2[%c0, %c0_0] : memref<8x4xbf16, #tpu.memory_space<vmem>>, vector<8x4xbf16>
    %c0_1 = arith.constant 0 : index
    %c0_2 = arith.constant 0 : index
    %1 = vector.load %arg4[%c0_1, %c0_2] : memref<16x72xbf16, #tpu.memory_space<vmem>>, vector<16x72xbf16>
    %c0_3 = arith.constant 0 : index
    %c0_4 = arith.constant 0 : index
    %2 = vector.load %arg3[%c0_3, %c0_4] : memref<8x1xf32, #tpu.memory_space<vmem>>, vector<8x1xf32>
    %c0_5 = arith.constant 0 : index
    %c0_6 = arith.constant 0 : index
    %3 = vector.load %arg5[%c0_5, %c0_6] : memref<16x1xf32, #tpu.memory_space<vmem>>, vector<16x1xf32>
    %c0_7 = arith.constant 0 : index
    %c0_8 = arith.constant 0 : index
    %4 = vector.load %arg6[%c0_7, %c0_8] : memref<9x256xf32, #tpu.memory_space<vmem>>, vector<9x256xf32>
    %5 = vector.extract_strided_slice %4 {offsets = [0, 0], sizes = [1, 256], strides = [1, 1]} : vector<9x256xf32> to vector<1x256xf32>
    %6 = vector.extract_strided_slice %4 {offsets = [1, 0], sizes = [1, 256], strides = [1, 1]} : vector<9x256xf32> to vector<1x256xf32>
    %7 = vector.extract_strided_slice %4 {offsets = [2, 0], sizes = [1, 256], strides = [1, 1]} : vector<9x256xf32> to vector<1x256xf32>
    %8 = vector.extract_strided_slice %4 {offsets = [3, 0], sizes = [1, 256], strides = [1, 1]} : vector<9x256xf32> to vector<1x256xf32>
    %9 = vector.extract_strided_slice %4 {offsets = [5, 0], sizes = [1, 256], strides = [1, 1]} : vector<9x256xf32> to vector<1x256xf32>
    %10 = vector.extract_strided_slice %4 {offsets = [6, 0], sizes = [1, 256], strides = [1, 1]} : vector<9x256xf32> to vector<1x256xf32>
    %11 = vector.extract_strided_slice %4 {offsets = [7, 0], sizes = [1, 256], strides = [1, 1]} : vector<9x256xf32> to vector<1x256xf32>
    %12 = vector.extract_strided_slice %4 {offsets = [8, 0], sizes = [1, 256], strides = [1, 1]} : vector<9x256xf32> to vector<1x256xf32>
    %c0_9 = arith.constant 0 : index
    %c0_10 = arith.constant 0 : index
    %c0_11 = arith.constant 0 : index
    %13 = vector.load %arg1[%c0_9, %c0_10, %c0_11] : memref<2x4x256xbf16, #tpu.memory_space<vmem>>, vector<1x4x256xbf16>
    %14 = vector.shape_cast %13 : vector<1x4x256xbf16> to vector<4x256xbf16>
    %cst = arith.constant dense<0.000000e+00> : vector<8x256xf32>
    %15 = tpu.matmul %0, %14, %cst {dimension_numbers = #tpu.dot_dimension_numbers<[1], [0], [0], [1], [0, 0, 1, 1], [], []>} : vector<8x4xbf16>, vector<4x256xbf16>, vector<8x256xf32> -> vector<8x256xf32>
    %16 = vector.broadcast %2 : vector<8x1xf32> to vector<8x256xf32>
    %17 = arith.addf %15, %16 : vector<8x256xf32>
    %cst_12 = arith.constant 0.000000e+00 : f32
    %18 = vector.broadcast %cst_12 : f32 to vector<8x256xf32>
    %19 = arith.maximumf %17, %18 : vector<8x256xf32>
    %c17_i32 = arith.constant 17 : i32
    %20 = tpu.dynamic_rotate %19 by %c17_i32 dim 1 : vector<8x256xf32>, i32 -> vector<8x256xf32>
    %21 = vector.broadcast %5 : vector<1x256xf32> to vector<8x256xf32>
    %22 = arith.mulf %20, %21 : vector<8x256xf32>
    %c16_i32 = arith.constant 16 : i32
    %23 = tpu.dynamic_rotate %19 by %c16_i32 dim 1 : vector<8x256xf32>, i32 -> vector<8x256xf32>
    %24 = vector.broadcast %6 : vector<1x256xf32> to vector<8x256xf32>
    %25 = arith.mulf %23, %24 : vector<8x256xf32>
    %c15_i32 = arith.constant 15 : i32
    %26 = tpu.dynamic_rotate %19 by %c15_i32 dim 1 : vector<8x256xf32>, i32 -> vector<8x256xf32>
    %27 = vector.broadcast %7 : vector<1x256xf32> to vector<8x256xf32>
    %28 = arith.mulf %26, %27 : vector<8x256xf32>
    %c1_i32 = arith.constant 1 : i32
    %29 = tpu.dynamic_rotate %19 by %c1_i32 dim 1 : vector<8x256xf32>, i32 -> vector<8x256xf32>
    %30 = vector.broadcast %8 : vector<1x256xf32> to vector<8x256xf32>
    %31 = arith.mulf %29, %30 : vector<8x256xf32>
    %c255_i32 = arith.constant 255 : i32
    %32 = tpu.dynamic_rotate %19 by %c255_i32 dim 1 : vector<8x256xf32>, i32 -> vector<8x256xf32>
    %33 = vector.broadcast %9 : vector<1x256xf32> to vector<8x256xf32>
    %34 = arith.mulf %32, %33 : vector<8x256xf32>
    %c241_i32 = arith.constant 241 : i32
    %35 = tpu.dynamic_rotate %19 by %c241_i32 dim 1 : vector<8x256xf32>, i32 -> vector<8x256xf32>
    %36 = vector.broadcast %10 : vector<1x256xf32> to vector<8x256xf32>
    %37 = arith.mulf %35, %36 : vector<8x256xf32>
    %c240_i32 = arith.constant 240 : i32
    %38 = tpu.dynamic_rotate %19 by %c240_i32 dim 1 : vector<8x256xf32>, i32 -> vector<8x256xf32>
    %39 = vector.broadcast %11 : vector<1x256xf32> to vector<8x256xf32>
    %40 = arith.mulf %38, %39 : vector<8x256xf32>
    %c239_i32 = arith.constant 239 : i32
    %41 = tpu.dynamic_rotate %19 by %c239_i32 dim 1 : vector<8x256xf32>, i32 -> vector<8x256xf32>
    %42 = vector.broadcast %12 : vector<1x256xf32> to vector<8x256xf32>
    %43 = arith.mulf %41, %42 : vector<8x256xf32>
    %44 = tpu.concatenate %22, %25, %28, %31, %19, %34, %37, %40, %43 in 0 : vector<8x256xf32>, vector<8x256xf32>, vector<8x256xf32>, vector<8x256xf32>, vector<8x256xf32>, vector<8x256xf32>, vector<8x256xf32>, vector<8x256xf32>, vector<8x256xf32> -> vector<72x256xf32>
    %45 = arith.truncf %44 : vector<72x256xf32> to vector<72x256xbf16>
    %cst_13 = arith.constant dense<0.000000e+00> : vector<16x256xf32>
    %46 = tpu.matmul %1, %45, %cst_13 {dimension_numbers = #tpu.dot_dimension_numbers<[1], [0], [0], [1], [0, 0, 1, 1], [], []>} : vector<16x72xbf16>, vector<72x256xbf16>, vector<16x256xf32> -> vector<16x256xf32>
    %47 = vector.broadcast %3 : vector<16x1xf32> to vector<16x256xf32>
    %48 = arith.addf %46, %47 : vector<16x256xf32>
    %cst_14 = arith.constant 0.000000e+00 : f32
    %49 = vector.broadcast %cst_14 : f32 to vector<16x256xf32>
    %50 = arith.maximumf %48, %49 : vector<16x256xf32>
    %c0_15 = arith.constant 0 : index
    %c0_16 = arith.constant 0 : index
    %c0_17 = arith.constant 0 : index
    %51 = vector.load %arg7[%c0_15, %c0_16, %c0_17] : memref<2x16x256xf32, #tpu.memory_space<vmem>>, vector<1x16x256xf32>
    %52 = vector.shape_cast %51 : vector<1x16x256xf32> to vector<16x256xf32>
    %53 = vector.shape_cast %50 : vector<16x256xf32> to vector<1x16x256xf32>
    tpu.vector_store %arg7[%c0_15, %c0_16, %c0_17], %53 {strides = array<i32>} : memref<2x16x256xf32, #tpu.memory_space<vmem>>, vector<1x16x256xf32>,
    %c1 = arith.constant 1 : index
    %c0_18 = arith.constant 0 : index
    %c0_19 = arith.constant 0 : index
    %54 = vector.load %arg1[%c1, %c0_18, %c0_19] : memref<2x4x256xbf16, #tpu.memory_space<vmem>>, vector<1x4x256xbf16>
    %55 = vector.shape_cast %54 : vector<1x4x256xbf16> to vector<4x256xbf16>
    %cst_20 = arith.constant dense<0.000000e+00> : vector<8x256xf32>
    %56 = tpu.matmul %0, %55, %cst_20 {dimension_numbers = #tpu.dot_dimension_numbers<[1], [0], [0], [1], [0, 0, 1, 1], [], []>} : vector<8x4xbf16>, vector<4x256xbf16>, vector<8x256xf32> -> vector<8x256xf32>
    %57 = vector.broadcast %2 : vector<8x1xf32> to vector<8x256xf32>
    %58 = arith.addf %56, %57 : vector<8x256xf32>
    %cst_21 = arith.constant 0.000000e+00 : f32
    %59 = vector.broadcast %cst_21 : f32 to vector<8x256xf32>
    %60 = arith.maximumf %58, %59 : vector<8x256xf32>
    %c17_i32_22 = arith.constant 17 : i32
    %61 = tpu.dynamic_rotate %60 by %c17_i32_22 dim 1 : vector<8x256xf32>, i32 -> vector<8x256xf32>
    %62 = vector.broadcast %5 : vector<1x256xf32> to vector<8x256xf32>
    %63 = arith.mulf %61, %62 : vector<8x256xf32>
    %c16_i32_23 = arith.constant 16 : i32
    %64 = tpu.dynamic_rotate %60 by %c16_i32_23 dim 1 : vector<8x256xf32>, i32 -> vector<8x256xf32>
    %65 = vector.broadcast %6 : vector<1x256xf32> to vector<8x256xf32>
    %66 = arith.mulf %64, %65 : vector<8x256xf32>
    %c15_i32_24 = arith.constant 15 : i32
    %67 = tpu.dynamic_rotate %60 by %c15_i32_24 dim 1 : vector<8x256xf32>, i32 -> vector<8x256xf32>
    %68 = vector.broadcast %7 : vector<1x256xf32> to vector<8x256xf32>
    %69 = arith.mulf %67, %68 : vector<8x256xf32>
    %c1_i32_25 = arith.constant 1 : i32
    %70 = tpu.dynamic_rotate %60 by %c1_i32_25 dim 1 : vector<8x256xf32>, i32 -> vector<8x256xf32>
    %71 = vector.broadcast %8 : vector<1x256xf32> to vector<8x256xf32>
    %72 = arith.mulf %70, %71 : vector<8x256xf32>
    %c255_i32_26 = arith.constant 255 : i32
    %73 = tpu.dynamic_rotate %60 by %c255_i32_26 dim 1 : vector<8x256xf32>, i32 -> vector<8x256xf32>
    %74 = vector.broadcast %9 : vector<1x256xf32> to vector<8x256xf32>
    %75 = arith.mulf %73, %74 : vector<8x256xf32>
    %c241_i32_27 = arith.constant 241 : i32
    %76 = tpu.dynamic_rotate %60 by %c241_i32_27 dim 1 : vector<8x256xf32>, i32 -> vector<8x256xf32>
    %77 = vector.broadcast %10 : vector<1x256xf32> to vector<8x256xf32>
    %78 = arith.mulf %76, %77 : vector<8x256xf32>
    %c240_i32_28 = arith.constant 240 : i32
    %79 = tpu.dynamic_rotate %60 by %c240_i32_28 dim 1 : vector<8x256xf32>, i32 -> vector<8x256xf32>
    %80 = vector.broadcast %11 : vector<1x256xf32> to vector<8x256xf32>
    %81 = arith.mulf %79, %80 : vector<8x256xf32>
    %c239_i32_29 = arith.constant 239 : i32
    %82 = tpu.dynamic_rotate %60 by %c239_i32_29 dim 1 : vector<8x256xf32>, i32 -> vector<8x256xf32>
    %83 = vector.broadcast %12 : vector<1x256xf32> to vector<8x256xf32>
    %84 = arith.mulf %82, %83 : vector<8x256xf32>
    %85 = tpu.concatenate %63, %66, %69, %72, %60, %75, %78, %81, %84 in 0 : vector<8x256xf32>, vector<8x256xf32>, vector<8x256xf32>, vector<8x256xf32>, vector<8x256xf32>, vector<8x256xf32>, vector<8x256xf32>, vector<8x256xf32>, vector<8x256xf32> -> vector<72x256xf32>
    %86 = arith.truncf %85 : vector<72x256xf32> to vector<72x256xbf16>
    %cst_30 = arith.constant dense<0.000000e+00> : vector<16x256xf32>
    %87 = tpu.matmul %1, %86, %cst_30 {dimension_numbers = #tpu.dot_dimension_numbers<[1], [0], [0], [1], [0, 0, 1, 1], [], []>} : vector<16x72xbf16>, vector<72x256xbf16>, vector<16x256xf32> -> vector<16x256xf32>
    %88 = vector.broadcast %3 : vector<16x1xf32> to vector<16x256xf32>
    %89 = arith.addf %87, %88 : vector<16x256xf32>
    %cst_31 = arith.constant 0.000000e+00 : f32
    %90 = vector.broadcast %cst_31 : f32 to vector<16x256xf32>
    %91 = arith.maximumf %89, %90 : vector<16x256xf32>
    %c1_32 = arith.constant 1 : index
    %c0_33 = arith.constant 0 : index
    %c0_34 = arith.constant 0 : index
    %92 = vector.load %arg7[%c1_32, %c0_33, %c0_34] : memref<2x16x256xf32, #tpu.memory_space<vmem>>, vector<1x16x256xf32>
    %93 = vector.shape_cast %92 : vector<1x16x256xf32> to vector<16x256xf32>
    %94 = vector.shape_cast %91 : vector<16x256xf32> to vector<1x16x256xf32>
    tpu.vector_store %arg7[%c1_32, %c0_33, %c0_34], %94 {strides = array<i32>} : memref<2x16x256xf32, #tpu.memory_space<vmem>>, vector<1x16x256xf32>,
    return
  }
  func.func @transform_0(%arg0: i32) -> (i32, i32, i32) {
    %c0_i32 = arith.constant 0 : i32
    %c0_i32_0 = arith.constant 0 : i32
    %c0_i32_1 = arith.constant 0 : i32
    %c0_i32_2 = arith.constant 0 : i32
    return %c0_i32, %c0_i32_0, %c0_i32_1 : i32, i32, i32
  }
  func.func @transform_1(%arg0: i32) -> (i32, i32) {
    %c0_i32 = arith.constant 0 : i32
    %c0_i32_0 = arith.constant 0 : i32
    %c0_i32_1 = arith.constant 0 : i32
    return %c0_i32, %c0_i32_0 : i32, i32
  }
  func.func @transform_2(%arg0: i32) -> (i32, i32) {
    %c0_i32 = arith.constant 0 : i32
    %c0_i32_0 = arith.constant 0 : i32
    %c0_i32_1 = arith.constant 0 : i32
    return %c0_i32, %c0_i32_0 : i32, i32
  }
  func.func @transform_3(%arg0: i32) -> (i32, i32) {
    %c0_i32 = arith.constant 0 : i32
    %c0_i32_0 = arith.constant 0 : i32
    %c0_i32_1 = arith.constant 0 : i32
    return %c0_i32, %c0_i32_0 : i32, i32
  }
  func.func @transform_4(%arg0: i32) -> (i32, i32) {
    %c0_i32 = arith.constant 0 : i32
    %c0_i32_0 = arith.constant 0 : i32
    %c0_i32_1 = arith.constant 0 : i32
    return %c0_i32, %c0_i32_0 : i32, i32
  }
  func.func @transform_5(%arg0: i32) -> (i32, i32) {
    %c0_i32 = arith.constant 0 : i32
    %c0_i32_0 = arith.constant 0 : i32
    %c0_i32_1 = arith.constant 0 : i32
    return %c0_i32, %c0_i32_0 : i32, i32
  }
  func.func @transform_6(%arg0: i32) -> (i32, i32, i32) {
    %c0_i32 = arith.constant 0 : i32
    %c0_i32_0 = arith.constant 0 : i32
    %c0_i32_1 = arith.constant 0 : i32
    %c0_i32_2 = arith.constant 0 : i32
    return %c0_i32, %c0_i32_0, %c0_i32_1 : i32, i32, i32
  }
}

</mosaic_0001>

<llo_original>
// kernel: fire_pallas.1
$region0: #{fire_pallas.1}
  #allocation0 [shape = 'u32[]', space=smem, size = 0x4, offset = 0x4, fixed_abs, tag = 'smem constant byte address 0x4 - core index']
  #allocation1 [shape = 'u32[144,128]{1,0:T(1,128)}', space=vmem, size = 0x12000, scoped, tag = 'internal scratch']
  %s0 = inlined_call_operand.vmem [shape: bf16[2,4,256], index: 0, kind: input, shape index: {}]
  %s1 = inlined_call_operand.vmem [shape: bf16[8,4], index: 1, kind: input, shape index: {}]
  %s2 = inlined_call_operand.vmem [shape: f32[8,1], index: 2, kind: input, shape index: {}]
  %s3 = inlined_call_operand.vmem [shape: bf16[16,72], index: 3, kind: input, shape index: {}]
  %s4 = inlined_call_operand.vmem [shape: f32[16,1], index: 4, kind: input, shape index: {}]
  %s5 = inlined_call_operand.vmem [shape: f32[9,256], index: 5, kind: input, shape index: {}]
  %s6 = inlined_call_operand.vmem [shape: f32[2,16,256], index: 6, kind: output, shape index: {}]
  %s7 = sld [smem:[#allocation0]]
  $region34: #{fire_pallas.1} parent=0
    _
  %s9 = ssub.s32 1, %s7
  %s10 = scalar_select 0, %s9, %s7
  // Predicated region
  $region2: #{fire_pallas.1} parent=0 // pred_check
    _
  $region3: #{fire_pallas.1} parent=0 // pred_check_branch
    %12 = sbr.rel (0) target = $region5
  $region4: #{fire_pallas.1} parent=0 // pred_region
    _
  $region5: #{fire_pallas.1} parent=0 // pred_fallthru
    _
  // Predicated region
  $region6: #{fire_pallas.1} parent=0 // pred_check
    _
  $region7: #{fire_pallas.1} parent=0 // pred_check_branch
    %14 = sbr.rel (0) target = $region9
  $region8: #{fire_pallas.1} parent=0 // pred_region
    _
  $region9: #{fire_pallas.1} parent=0 // pred_fallthru
    _
  // Predicated region
  $region10: #{fire_pallas.1} parent=0 // pred_check
    _
  $region11: #{fire_pallas.1} parent=0 // pred_check_branch
    %16 = sbr.rel (0) target = $region13
  $region12: #{fire_pallas.1} parent=0 // pred_region
    _
  $region13: #{fire_pallas.1} parent=0 // pred_fallthru
    _
  // Predicated region
  $region14: #{fire_pallas.1} parent=0 // pred_check
    _
  $region15: #{fire_pallas.1} parent=0 // pred_check_branch
    %18 = sbr.rel (0) target = $region17
  $region16: #{fire_pallas.1} parent=0 // pred_region
    _
  $region17: #{fire_pallas.1} parent=0 // pred_fallthru
    _
  // Predicated region
  $region18: #{fire_pallas.1} parent=0 // pred_check
    _
  $region19: #{fire_pallas.1} parent=0 // pred_check_branch
    %20 = sbr.rel (0) target = $region21
  $region20: #{fire_pallas.1} parent=0 // pred_region
    _
  $region21: #{fire_pallas.1} parent=0 // pred_fallthru
    _
  // Predicated region
  $region22: #{fire_pallas.1} parent=0 // pred_check
    _
  $region23: #{fire_pallas.1} parent=0 // pred_check_branch
    %22 = sbr.rel (0) target = $region25
  $region24: #{fire_pallas.1} parent=0 // pred_region
    _
  $region25: #{fire_pallas.1} parent=0 // pred_fallthru
    _
  %v24 = vld [vmem:[%s1] sm:$0xf]
  %v25 = vld [vmem:[%s3] sm:$0xf]
  %v26 = vld [vmem:[%s3 + $0x4] sm:$0xf]
  %v27 = vld [vmem:[%s2] sm:$0xff]
  %v28 = vld [vmem:[%s4] sm:$0xff]
  %v29 = vld [vmem:[%s4 + $0x8] sm:$0xff]
  %v30 = vld [vmem:[%s5] sm:$0xff]
  %v31 = vld [vmem:[%s5 + $0x8] sm:$0xff]
  %v32 = vld [vmem:[%s5 + $0x10] sm:$0x1]
  %v33 = vld [vmem:[%s5 + $0x18] sm:$0x1]
  %v34 = vld [vmem:[%s0] sm:$0xf]
  %36 = vset.pattern.permute.xlu0 0
  %37 = vperm.xlu0 %36, %v27
  %v38 = vpop.permute.xlu0 %37
  %v42 = vunpack.c.l.s4 1983009808
  %v43 = vunpack.c.0.s8 %v42
  %v44 = vlaneseq
  %v45 = vshrl.u32 %v44, 7
  %v46 = vsub.s32 %v43, %v45
  %v47 = vrot.slane %v34, %v46
  %v48 = vcombine.high %v47, %v47
  %vm49 = vcmask 31744
  %v51 = vsel %vm49, %v24, 0
  %vm53 = vcmask 1041408
  %v55 = vsel %vm53, %v47, 0
  %v58 = vsel %vm53, %v48, 0
  %60 = vmatprep.subr.bf16.mxu0 %v58
  %61 = vmatpush1.bf16.msra.mxu0 %v55
  %62 = vmatprep.subr.bf16.mxu0 0
  %63 = vmatpush1.bf16.msra.mxu0 0
  %64 = vmatprep.subr.bf16.mxu0 0
  %65 = vmatpush1.bf16.msra.mxu0 0
  %66 = vmatprep.subr.bf16.mxu0 0
  %67 = vmatpush1.bf16.msra.mxu0 0
  %68 = vmatprep.subr.bf16.mxu0 0
  %69 = vmatpush1.bf16.msra.mxu0 0
  %70 = vmatprep.subr.bf16.mxu0 0
  %71 = vmatpush1.bf16.msra.mxu0 0
  %72 = vmatprep.subr.bf16.mxu0 0
  %73 = vmatpush1.bf16.msra.mxu0 0
  %74 = vmatprep.subr.bf16.mxu0 0
  %75 = vmatpush1.bf16.msra.mxu0 0
  %76 = vmatprep.subr.bf16.mxu0 0
  %77 = vmatpush1.bf16.msra.mxu0 0
  %78 = vmatprep.subr.bf16.mxu0 0
  %79 = vmatpush1.bf16.msra.mxu0 0
  %80 = vmatprep.subr.bf16.mxu0 0
  %81 = vmatpush1.bf16.msra.mxu0 0
  %82 = vmatprep.subr.bf16.mxu0 0
  %83 = vmatpush1.bf16.msra.mxu0 0
  %84 = vmatprep.subr.bf16.mxu0 0
  %85 = vmatpush1.bf16.msra.mxu0 0
  %86 = vmatprep.subr.bf16.mxu0 0
  %87 = vmatpush1.bf16.msra.mxu0 0
  %88 = vmatprep.subr.bf16.mxu0 0
  %89 = vmatpush1.bf16.msra.mxu0 0
  %90 = vmatprep.subr.bf16.mxu0 0
  %91 = vmatpush1.bf16.msra.mxu0 0
  %92 = vmatprep.mubr.bf16.mxu0 0
  %93 = vmatmul.mubr.bf16.gmra.mrb[0].mxu0 %v51
  %v94 = vpop.f32.mrb[0].mxu0
  %v95 = vadd.f32 %v38, %v94
  %v96 = vpop.f32.mrb[0].mxu0
  %v97 = vadd.f32 %v38, %v96
  %v98 = vpop.f32.mrb[0].mxu0
  %v99 = vpop.f32.mrb[0].mxu0
  %100 = vdwg.mxu0
  %v101 = vmax.f32 %v95, 0.0
  %v102 = vmax.f32 %v97, 0.0
  %103 = vrot.lane.b32.xlu0 %v101, 17
  %v104 = vpop.permute.xlu0 %103
  %105 = vrot.lane.b32.xlu0 %v102, 17
  %v106 = vpop.permute.xlu0 %105
  %v107 = vlaneseq
  %v108 = vand.u32 %v107, 127
  %vm109 = vcmp.lt.s32.totalorder %v108, 17
  %v110 = vsel %vm109, %v104, %v106
  %v111 = vsel %vm109, %v106, %v104
  %v112 = vlaneseq
  %v113 = vshrl.u32 %v112, 7
  %v114 = vsub.s32 0, %v113
  %v115 = vrot.slane %v30, %v114
  %v116 = vlaneseq
  %v117 = vshrl.u32 %v116, 7
  %v118 = vsub.s32 0, %v117
  %v119 = vrot.slane %v31, %v118
  %v120 = vmul.f32 %v111, %v115
  %v121 = vmul.f32 %v110, %v119
  %122 = vrot.lane.b32.xlu0 %v101, 16
  %v123 = vpop.permute.xlu0 %122
  %124 = vrot.lane.b32.xlu0 %v102, 16
  %v125 = vpop.permute.xlu0 %124
  %vm126 = vcmp.lt.s32.totalorder %v108, 16
  %v127 = vsel %vm126, %v123, %v125
  %v128 = vsel %vm126, %v125, %v123
  %v129 = vlaneseq
  %v130 = vshrl.u32 %v129, 7
  %v131 = vsub.s32 1, %v130
  %v132 = vrot.slane %v30, %v131
  %v133 = vlaneseq
  %v134 = vshrl.u32 %v133, 7
  %v135 = vsub.s32 1, %v134
  %v136 = vrot.slane %v31, %v135
  %v137 = vmul.f32 %v128, %v132
  %v138 = vmul.f32 %v127, %v136
  %139 = vrot.lane.b32.xlu0 %v101, 15
  %v140 = vpop.permute.xlu0 %139
  %141 = vrot.lane.b32.xlu0 %v102, 15
  %v142 = vpop.permute.xlu0 %141
  %vm143 = vcmp.lt.s32.totalorder %v108, 15
  %v144 = vsel %vm143, %v140, %v142
  %v145 = vsel %vm143, %v142, %v140
  %v146 = vlaneseq
  %v147 = vshrl.u32 %v146, 7
  %v148 = vsub.s32 2, %v147
  %v149 = vrot.slane %v30, %v148
  %v150 = vlaneseq
  %v151 = vshrl.u32 %v150, 7
  %v152 = vsub.s32 2, %v151
  %v153 = vrot.slane %v31, %v152
  %v154 = vmul.f32 %v145, %v149
  %v155 = vmul.f32 %v144, %v153
  %156 = vrot.lane.b32.xlu0 %v101, 1
  %v157 = vpop.permute.xlu0 %156
  %158 = vrot.lane.b32.xlu0 %v102, 1
  %v159 = vpop.permute.xlu0 %158
  %vm160 = vcmp.lt.s32.totalorder %v108, 1
  %v161 = vsel %vm160, %v157, %v159
  %v162 = vsel %vm160, %v159, %v157
  %v163 = vlaneseq
  %v164 = vshrl.u32 %v163, 7
  %v165 = vsub.s32 3, %v164
  %v166 = vrot.slane %v30, %v165
  %v167 = vlaneseq
  %v168 = vshrl.u32 %v167, 7
  %v169 = vsub.s32 3, %v168
  %v170 = vrot.slane %v31, %v169
  %v171 = vmul.f32 %v162, %v166
  %v172 = vmul.f32 %v161, %v170
  %173 = vrot.lane.b32.xlu0 %v101, 127
  %v174 = vpop.permute.xlu0 %173
  %175 = vrot.lane.b32.xlu0 %v102, 127
  %v176 = vpop.permute.xlu0 %175
  %vm177 = vcmp.lt.s32.totalorder %v108, 127
  %v178 = vsel %vm177, %v174, %v176
  %v179 = vsel %vm177, %v176, %v174
  %v180 = vlaneseq
  %v181 = vshrl.u32 %v180, 7
  %v182 = vsub.s32 5, %v181
  %v183 = vrot.slane %v30, %v182
  %v184 = vlaneseq
  %v185 = vshrl.u32 %v184, 7
  %v186 = vsub.s32 5, %v185
  %v187 = vrot.slane %v31, %v186
  %v188 = vmul.f32 %v178, %v183
  %v189 = vmul.f32 %v179, %v187
  %190 = vrot.lane.b32.xlu0 %v101, 113
  %v191 = vpop.permute.xlu0 %190
  %192 = vrot.lane.b32.xlu0 %v102, 113
  %v193 = vpop.permute.xlu0 %192
  %vm194 = vcmp.lt.s32.totalorder %v108, 113
  %v195 = vsel %vm194, %v191, %v193
  %v196 = vsel %vm194, %v193, %v191
  %v197 = vlaneseq
  %v198 = vshrl.u32 %v197, 7
  %v199 = vsub.s32 6, %v198
  %v200 = vrot.slane %v30, %v199
  %v201 = vlaneseq
  %v202 = vshrl.u32 %v201, 7
  %v203 = vsub.s32 6, %v202
  %v204 = vrot.slane %v31, %v203
  %v205 = vmul.f32 %v195, %v200
  %v206 = vmul.f32 %v196, %v204
  %207 = vrot.lane.b32.xlu0 %v101, 112
  %v208 = vpop.permute.xlu0 %207
  %209 = vrot.lane.b32.xlu0 %v102, 112
  %v210 = vpop.permute.xlu0 %209
  %vm211 = vcmp.lt.s32.totalorder %v108, 112
  %v212 = vsel %vm211, %v208, %v210
  %v213 = vsel %vm211, %v210, %v208
  %v214 = vlaneseq
  %v215 = vshrl.u32 %v214, 7
  %v216 = vsub.s32 7, %v215
  %v217 = vrot.slane %v30, %v216
  %v218 = vlaneseq
  %v219 = vshrl.u32 %v218, 7
  %v220 = vsub.s32 7, %v219
  %v221 = vrot.slane %v31, %v220
  %v222 = vmul.f32 %v212, %v217
  %v223 = vmul.f32 %v213, %v221
  %224 = vrot.lane.b32.xlu0 %v101, 111
  %v225 = vpop.permute.xlu0 %224
  %226 = vrot.lane.b32.xlu0 %v102, 111
  %v227 = vpop.permute.xlu0 %226
  %vm228 = vcmp.lt.s32.totalorder %v108, 111
  %v229 = vsel %vm228, %v225, %v227
  %v230 = vsel %vm228, %v227, %v225
  %v231 = vlaneseq
  %v232 = vshrl.u32 %v231, 7
  %v233 = vsub.s32 0, %v232
  %v234 = vrot.slane %v32, %v233
  %v235 = vlaneseq
  %v236 = vshrl.u32 %v235, 7
  %v237 = vsub.s32 0, %v236
  %v238 = vrot.slane %v33, %v237
  %v239 = vmul.f32 %v229, %v234
  %v240 = vmul.f32 %v230, %v238
  %v241 = vpack.c.bf16 %v137, %v120
  %v242 = vpack.c.bf16 %v138, %v121
  %v243 = vpack.c.bf16 %v171, %v154
  %v244 = vpack.c.bf16 %v172, %v155
  %v245 = vpack.c.bf16 %v188, %v101
  %v246 = vpack.c.bf16 %v189, %v102
  %v247 = vpack.c.bf16 %v222, %v205
  %v248 = vpack.c.bf16 %v223, %v206
  %v249 = vpack.c.bf16 %v239, %v239
  %v250 = vpack.c.bf16 %v240, %v240
  %252 = vset.pattern.permute.xlu0 0
  %253 = vperm.xlu0 %252, %v28
  %v254 = vpop.permute.xlu0 %253
  %257 = vset.pattern.permute.xlu0 0
  %258 = vperm.xlu0 %257, %v29
  %v259 = vpop.permute.xlu0 %258
  %v263 = vunpack.c.l.b16 %v25
  %v264 = vunpack.c.l.b16 %v26
  %v265 = vpack.c.b16 %v264, %v263
  %vm266 = vcmask 588800
  %v268 = vsel %vm266, %v265, 0
  %vm270 = vcmask 1043456
  %v272 = vsel %vm270, %v249, 0
  %v275 = vsel %vm270, %v250, 0
  %277 = vmatprep.subr.bf16.mxu0 %v242
  %278 = vmatpush1.bf16.msra.mxu0 %v241
  %279 = vmatprep.subr.bf16.mxu0 %v244
  %280 = vmatpush1.bf16.msra.mxu0 %v243
  %281 = vmatprep.subr.bf16.mxu0 %v246
  %282 = vmatpush1.bf16.msra.mxu0 %v245
  %283 = vmatprep.subr.bf16.mxu0 %v248
  %284 = vmatpush1.bf16.msra.mxu0 %v247
  %285 = vmatprep.subr.bf16.mxu0 %v275
  %286 = vmatpush1.bf16.msra.mxu0 %v272
  %287 = vmatprep.subr.bf16.mxu0 0
  %288 = vmatpush1.bf16.msra.mxu0 0
  %289 = vmatprep.subr.bf16.mxu0 0
  %290 = vmatpush1.bf16.msra.mxu0 0
  %291 = vmatprep.subr.bf16.mxu0 0
  %292 = vmatpush1.bf16.msra.mxu0 0
  %293 = vmatprep.subr.bf16.mxu0 0
  %294 = vmatpush1.bf16.msra.mxu0 0
  %295 = vmatprep.subr.bf16.mxu0 0
  %296 = vmatpush1.bf16.msra.mxu0 0
  %297 = vmatprep.subr.bf16.mxu0 0
  %298 = vmatpush1.bf16.msra.mxu0 0
  %299 = vmatprep.subr.bf16.mxu0 0
  %300 = vmatpush1.bf16.msra.mxu0 0
  %301 = vmatprep.subr.bf16.mxu0 0
  %302 = vmatpush1.bf16.msra.mxu0 0
  %303 = vmatprep.subr.bf16.mxu0 0
  %304 = vmatpush1.bf16.msra.mxu0 0
  %305 = vmatprep.subr.bf16.mxu0 0
  %306 = vmatpush1.bf16.msra.mxu0 0
  %307 = vmatprep.subr.bf16.mxu0 0
  %308 = vmatpush1.bf16.msra.mxu0 0
  %309 = vmatprep.mubr.bf16.mxu0 0
  %310 = vmatmul.mubr.bf16.gmra.mrb[0].mxu0 %v268
  %v311 = vpop.f32.mrb[0].mxu0
  %v312 = vadd.f32 %v254, %v311
  %v313 = vpop.f32.mrb[0].mxu0
  %v314 = vadd.f32 %v254, %v313
  %v315 = vpop.f32.mrb[0].mxu0
  %v316 = vadd.f32 %v259, %v315
  %v317 = vpop.f32.mrb[0].mxu0
  %v318 = vadd.f32 %v259, %v317
  %319 = vdwg.mxu0
  %v320 = vmax.f32 %v312, 0.0
  %v321 = vmax.f32 %v314, 0.0
  %v322 = vmax.f32 %v316, 0.0
  %v323 = vmax.f32 %v318, 0.0
  %324 = vst [vmem:[%s6] sm:$0xff] %v320
  %325 = vst [vmem:[%s6 + $0x8] sm:$0xff] %v321
  %326 = vst [vmem:[%s6 + $0x10] sm:$0xff] %v322
  %327 = vst [vmem:[%s6 + $0x18] sm:$0xff] %v323
  %s328 = scalar_lea.vmem %s0, 4
  %v329 = vld [vmem:[%s328] sm:$0xf]
  %v332 = vunpack.c.l.s4 1983009808
  %v333 = vunpack.c.0.s8 %v332
  %v334 = vlaneseq
  %v335 = vshrl.u32 %v334, 7
  %v336 = vsub.s32 %v333, %v335
  %v337 = vrot.slane %v329, %v336
  %v338 = vcombine.high %v337, %v337
  %v340 = vsel %vm53, %v337, 0
  %v343 = vsel %vm53, %v338, 0
  %345 = vmatprep.subr.bf16.mxu0 %v343
  %346 = vmatpush1.bf16.msra.mxu0 %v340
  %347 = vmatprep.subr.bf16.mxu0 0
  %348 = vmatpush1.bf16.msra.mxu0 0
  %349 = vmatprep.subr.bf16.mxu0 0
  %350 = vmatpush1.bf16.msra.mxu0 0
  %351 = vmatprep.subr.bf16.mxu0 0
  %352 = vmatpush1.bf16.msra.mxu0 0
  %353 = vmatprep.subr.bf16.mxu0 0
  %354 = vmatpush1.bf16.msra.mxu0 0
  %355 = vmatprep.subr.bf16.mxu0 0
  %356 = vmatpush1.bf16.msra.mxu0 0
  %357 = vmatprep.subr.bf16.mxu0 0
  %358 = vmatpush1.bf16.msra.mxu0 0
  %359 = vmatprep.subr.bf16.mxu0 0
  %360 = vmatpush1.bf16.msra.mxu0 0
  %361 = vmatprep.subr.bf16.mxu0 0
  %362 = vmatpush1.bf16.msra.mxu0 0
  %363 = vmatprep.subr.bf16.mxu0 0
  %364 = vmatpush1.bf16.msra.mxu0 0
  %365 = vmatprep.subr.bf16.mxu0 0
  %366 = vmatpush1.bf16.msra.mxu0 0
  %367 = vmatprep.subr.bf16.mxu0 0
  %368 = vmatpush1.bf16.msra.mxu0 0
  %369 = vmatprep.subr.bf16.mxu0 0
  %370 = vmatpush1.bf16.msra.mxu0 0
  %371 = vmatprep.subr.bf16.mxu0 0
  %372 = vmatpush1.bf16.msra.mxu0 0
  %373 = vmatprep.subr.bf16.mxu0 0
  %374 = vmatpush1.bf16.msra.mxu0 0
  %375 = vmatprep.subr.bf16.mxu0 0
  %376 = vmatpush1.bf16.msra.mxu0 0
  %377 = vmatprep.mubr.bf16.mxu0 0
  %378 = vmatmul.mubr.bf16.gmra.mrb[0].mxu0 %v51
  %v379 = vpop.f32.mrb[0].mxu0
  %v380 = vadd.f32 %v38, %v379
  %v381 = vpop.f32.mrb[0].mxu0
  %v382 = vadd.f32 %v38, %v381
  %v383 = vpop.f32.mrb[0].mxu0
  %v384 = vpop.f32.mrb[0].mxu0
  %385 = vdwg.mxu0
  %v386 = vmax.f32 %v380, 0.0
  %v387 = vmax.f32 %v382, 0.0
  %388 = vrot.lane.b32.xlu0 %v386, 17
  %v389 = vpop.permute.xlu0 %388
  %390 = vrot.lane.b32.xlu0 %v387, 17
  %v391 = vpop.permute.xlu0 %390
  %v392 = vsel %vm109, %v389, %v391
  %v393 = vsel %vm109, %v391, %v389
  %v394 = vmul.f32 %v393, %v115
  %v395 = vmul.f32 %v392, %v119
  %396 = vrot.lane.b32.xlu0 %v386, 16
  %v397 = vpop.permute.xlu0 %396
  %398 = vrot.lane.b32.xlu0 %v387, 16
  %v399 = vpop.permute.xlu0 %398
  %v400 = vsel %vm126, %v397, %v399
  %v401 = vsel %vm126, %v399, %v397
  %v402 = vmul.f32 %v401, %v132
  %v403 = vmul.f32 %v400, %v136
  %404 = vrot.lane.b32.xlu0 %v386, 15
  %v405 = vpop.permute.xlu0 %404
  %406 = vrot.lane.b32.xlu0 %v387, 15
  %v407 = vpop.permute.xlu0 %406
  %v408 = vsel %vm143, %v405, %v407
  %v409 = vsel %vm143, %v407, %v405
  %v410 = vmul.f32 %v409, %v149
  %v411 = vmul.f32 %v408, %v153
  %412 = vrot.lane.b32.xlu0 %v386, 1
  %v413 = vpop.permute.xlu0 %412
  %414 = vrot.lane.b32.xlu0 %v387, 1
  %v415 = vpop.permute.xlu0 %414
  %v416 = vsel %vm160, %v413, %v415
  %v417 = vsel %vm160, %v415, %v413
  %v418 = vmul.f32 %v417, %v166
  %v419 = vmul.f32 %v416, %v170
  %420 = vrot.lane.b32.xlu0 %v386, 127
  %v421 = vpop.permute.xlu0 %420
  %422 = vrot.lane.b32.xlu0 %v387, 127
  %v423 = vpop.permute.xlu0 %422
  %v424 = vsel %vm177, %v421, %v423
  %v425 = vsel %vm177, %v423, %v421
  %v426 = vmul.f32 %v424, %v183
  %v427 = vmul.f32 %v425, %v187
  %428 = vrot.lane.b32.xlu0 %v386, 113
  %v429 = vpop.permute.xlu0 %428
  %430 = vrot.lane.b32.xlu0 %v387, 113
  %v431 = vpop.permute.xlu0 %430
  %v432 = vsel %vm194, %v429, %v431
  %v433 = vsel %vm194, %v431, %v429
  %v434 = vmul.f32 %v432, %v200
  %v435 = vmul.f32 %v433, %v204
  %436 = vrot.lane.b32.xlu0 %v386, 112
  %v437 = vpop.permute.xlu0 %436
  %438 = vrot.lane.b32.xlu0 %v387, 112
  %v439 = vpop.permute.xlu0 %438
  %v440 = vsel %vm211, %v437, %v439
  %v441 = vsel %vm211, %v439, %v437
  %v442 = vmul.f32 %v440, %v217
  %v443 = vmul.f32 %v441, %v221
  %444 = vrot.lane.b32.xlu0 %v386, 111
  %v445 = vpop.permute.xlu0 %444
  %446 = vrot.lane.b32.xlu0 %v387, 111
  %v447 = vpop.permute.xlu0 %446
  %v448 = vsel %vm228, %v445, %v447
  %v449 = vsel %vm228, %v447, %v445
  %v450 = vmul.f32 %v448, %v234
  %v451 = vmul.f32 %v449, %v238
  %v452 = vpack.c.bf16 %v402, %v394
  %v453 = vpack.c.bf16 %v403, %v395
  %v454 = vpack.c.bf16 %v418, %v410
  %v455 = vpack.c.bf16 %v419, %v411
  %v456 = vpack.c.bf16 %v426, %v386
  %v457 = vpack.c.bf16 %v427, %v387
  %v458 = vpack.c.bf16 %v442, %v434
  %v459 = vpack.c.bf16 %v443, %v435
  %v460 = vpack.c.bf16 %v450, %v450
  %v461 = vpack.c.bf16 %v451, %v451
  %v463 = vsel %vm270, %v460, 0
  %v466 = vsel %vm270, %v461, 0
  %468 = vmatprep.subr.bf16.mxu0 %v453
  %469 = vmatpush1.bf16.msra.mxu0 %v452
  %470 = vmatprep.subr.bf16.mxu0 %v455
  %471 = vmatpush1.bf16.msra.mxu0 %v454
  %472 = vmatprep.subr.bf16.mxu0 %v457
  %473 = vmatpush1.bf16.msra.mxu0 %v456
  %474 = vmatprep.subr.bf16.mxu0 %v459
  %475 = vmatpush1.bf16.msra.mxu0 %v458
  %476 = vmatprep.subr.bf16.mxu0 %v466
  %477 = vmatpush1.bf16.msra.mxu0 %v463
  %478 = vmatprep.subr.bf16.mxu0 0
  %479 = vmatpush1.bf16.msra.mxu0 0
  %480 = vmatprep.subr.bf16.mxu0 0
  %481 = vmatpush1.bf16.msra.mxu0 0
  %482 = vmatprep.subr.bf16.mxu0 0
  %483 = vmatpush1.bf16.msra.mxu0 0
  %484 = vmatprep.subr.bf16.mxu0 0
  %485 = vmatpush1.bf16.msra.mxu0 0
  %486 = vmatprep.subr.bf16.mxu0 0
  %487 = vmatpush1.bf16.msra.mxu0 0
  %488 = vmatprep.subr.bf16.mxu0 0
  %489 = vmatpush1.bf16.msra.mxu0 0
  %490 = vmatprep.subr.bf16.mxu0 0
  %491 = vmatpush1.bf16.msra.mxu0 0
  %492 = vmatprep.subr.bf16.mxu0 0
  %493 = vmatpush1.bf16.msra.mxu0 0
  %494 = vmatprep.subr.bf16.mxu0 0
  %495 = vmatpush1.bf16.msra.mxu0 0
  %496 = vmatprep.subr.bf16.mxu0 0
  %497 = vmatpush1.bf16.msra.mxu0 0
  %498 = vmatprep.subr.bf16.mxu0 0
  %499 = vmatpush1.bf16.msra.mxu0 0
  %500 = vmatprep.mubr.bf16.mxu0 0
  %501 = vmatmul.mubr.bf16.gmra.mrb[0].mxu0 %v268
  %v502 = vpop.f32.mrb[0].mxu0
  %v503 = vadd.f32 %v254, %v502
  %v504 = vpop.f32.mrb[0].mxu0
  %v505 = vadd.f32 %v254, %v504
  %v506 = vpop.f32.mrb[0].mxu0
  %v507 = vadd.f32 %v259, %v506
  %v508 = vpop.f32.mrb[0].mxu0
  %v509 = vadd.f32 %v259, %v508
  %510 = vdwg.mxu0
  %v511 = vmax.f32 %v503, 0.0
  %v512 = vmax.f32 %v505, 0.0
  %v513 = vmax.f32 %v507, 0.0
  %v514 = vmax.f32 %v509, 0.0
  %s515 = scalar_lea.vmem %s6, 32
  %516 = vst [vmem:[%s515] sm:$0xff] %v511
  %517 = vst [vmem:[%s515 + $0x8] sm:$0xff] %v512
  %518 = vst [vmem:[%s515 + $0x10] sm:$0xff] %v513
  %519 = vst [vmem:[%s515 + $0x18] sm:$0xff] %v514
  // Predicated region
  $region26: #{fire_pallas.1} parent=0 // pred_check
    _
  $region27: #{fire_pallas.1} parent=0 // pred_check_branch
    %521 = sbr.rel (0) target = $region29
  $region28: #{fire_pallas.1} parent=0 // pred_region
    _
  $region29: #{fire_pallas.1} parent=0 // pred_fallthru
    _
  // Predicated region
  $region30: #{fire_pallas.1} parent=0 // pred_check
    _
  $region31: #{fire_pallas.1} parent=0 // pred_check_branch
    %523 = sbr.rel (0) target = $region33
  $region32: #{fire_pallas.1} parent=0 // pred_region
    _
  $region33: #{fire_pallas.1} parent=0 // pred_fallthru
    _

</llo_original>
